<compile_context>
chip_gen: v6e
topology: v6e:2x2x1
jax: 0.10.0
libtpu: 0.0.40
codegen_flags: <defaults>
</compile_context>

<pallas_src>
import jax
import jax.numpy as jnp
from jax.experimental import pallas as pl
from jax.experimental.pallas import tpu as pltpu


# ----------------------------------------------------------------------------
# Kernels
# ----------------------------------------------------------------------------
def _make_vpu_kernel(cin, cout):
    """Unrolled VPU kernel for small channel counts (weights/bias in SMEM).

    Builds the full (1, cout, T) tile in vregs and issues one dense store."""

    def kernel(w_ref, b_ref, x_ref, o_ref):
        # w_ref: SMEM (cout*cin,) f32   b_ref: SMEM (cout,) f32
        # x_ref: VMEM (1, cin, T)       o_ref: VMEM (1, cout, T)
        rows = []
        for co in range(cout):
            # Per-row loads (keeps live ranges small vs. hoisting the full tile).
            acc = x_ref[:, 0:1, :].astype(jnp.float32) * w_ref[co * cin] + b_ref[co]
            for ci in range(1, cin):
                acc = acc + x_ref[:, ci:ci + 1, :].astype(jnp.float32) * w_ref[co * cin + ci]
            rows.append(acc)
        out = jnp.concatenate(rows, axis=1)          # (1, cout, T)
        o_ref[...] = out.astype(o_ref.dtype)         # single dense store

    return kernel


def _mxu_kernel(w_ref, b_ref, x_ref, o_ref):
    """MXU kernel for larger channel counts (weights/bias resident in VMEM)."""
    # w_ref: (Cout, Cin) native dtype   b_ref: (Cout, 1) f32
    # x_ref: (1, Cin, T) native dtype   o_ref: (1, Cout, T)
    acc = jnp.dot(w_ref[...], x_ref[0], preferred_element_type=jnp.float32)
    o_ref[0] = (acc + b_ref[...]).astype(o_ref.dtype)


# ----------------------------------------------------------------------------
# Tiling helpers
# ----------------------------------------------------------------------------
def _vmem_capacity_bytes():
    try:
        cap = getattr(pltpu.get_tpu_info(), "vmem_capacity_bytes", None)
        if cap:
            return int(cap)
    except Exception:
        pass
    return 64 * 1024 * 1024  # conservative fallback (v7x physical VMEM)


def _round_up(v, m):
    return ((v + m - 1) // m) * m


def _pick_tile_hw(hw, cin, cout, itemsize, max_lanes, vmem_budget_bytes):
    """Lane-dense spatial tile (multiple of 128) whose double-buffered in+out
    footprint — with channel dims rounded up to physical sublane tiles — stays
    inside the VMEM budget.  Partial tail tiles handled by a cdiv grid."""
    if hw <= 128:
        return hw  # full lane extent (block dim == array dim is always legal)
    sub = 8 if itemsize >= 4 else (16 if itemsize == 2 else 32)
    cin_p = _round_up(cin, sub)
    cout_p = _round_up(cout, sub)
    bytes_per_lane = 2 * (cin_p + cout_p) * itemsize  # double-buffered in + out
    max_t = max(128, (vmem_budget_bytes // bytes_per_lane) // 128 * 128)
    t = min(max_t, max_lanes, _round_up(hw, 128))
    return max(128, t)


# ----------------------------------------------------------------------------
# Forward wrapper
# ----------------------------------------------------------------------------
def outconv_forward(x_nchw, weight, bias):
    """1x1 conv forward.

    x_nchw : (N, Cin, H, W)
    weight : (Cout, Cin, 1, 1)   -- PyTorch Conv2d weight layout
    bias   : (Cout,)
    returns (N, Cout, H, W)
    """
    N, Cin, H, W = x_nchw.shape
    Cout = weight.shape[0]
    HW = H * W
    itemsize = jnp.dtype(x_nchw.dtype).itemsize

    # Free reshape: keep NCHW ordering, spatial becomes the (lane) minor axis.
    x3d = x_nchw.reshape(N, Cin, HW)

    # Route mid/large channel counts to the MXU (memory-bound); only truly tiny
    # channel mixes stay on the unrolled VPU path.
    use_vpu = (Cin < 16) and (Cin * Cout <= 64)

    vmem_cap = _vmem_capacity_bytes()
    vmem_budget = (vmem_cap * 3) // 8                 # ~24 MiB (v7x) / ~48 MiB (v5e/v6e)
    vmem_limit = max(32 << 20, min(vmem_cap // 2, 96 << 20))

    max_lanes = 4096 if use_vpu else 8192
    T = _pick_tile_hw(HW, Cin, Cout, itemsize, max_lanes, vmem_budget)
    num_t = pl.cdiv(HW, T)
    # Keep >= 2 grid steps when possible so both v7x TensorCores get work.
    if N * num_t < 2 and HW > 128:
        T = max(128, _round_up((HW + 1) // 2, 128))
        num_t = pl.cdiv(HW, T)
    grid = (N, num_t)

    x_spec = pl.BlockSpec((1, Cin, T), lambda n, t: (n, 0, t))
    o_spec = pl.BlockSpec((1, Cout, T), lambda n, t: (n, 0, t))

    if use_vpu:
        kernel = _make_vpu_kernel(Cin, Cout)
        w_arg = weight.reshape(Cout * Cin).astype(jnp.float32)
        b_arg = bias.astype(jnp.float32)
        in_specs = [
            pl.BlockSpec(memory_space=pltpu.MemorySpace.SMEM),  # weights (scalars)
            pl.BlockSpec(memory_space=pltpu.MemorySpace.SMEM),  # bias (scalars)
            x_spec,
        ]
    else:
        kernel = _mxu_kernel
        # Keep native dtype operands for the MXU (bf16 stays bf16); accumulate in f32.
        w_arg = weight.reshape(Cout, Cin).astype(x_nchw.dtype)
        b_arg = bias.reshape(Cout, 1).astype(jnp.float32)
        in_specs = [
            pl.BlockSpec((Cout, Cin), lambda n, t: (0, 0)),  # resident weights
            pl.BlockSpec((Cout, 1), lambda n, t: (0, 0)),    # resident bias
            x_spec,
        ]

    out3d = pl.pallas_call(
        kernel,
        out_shape=jax.ShapeDtypeStruct((N, Cout, HW), x_nchw.dtype),
        grid_spec=pltpu.PrefetchScalarGridSpec(
            num_scalar_prefetch=0,
            grid=grid,
            in_specs=in_specs,
            out_specs=o_spec,
        ),
        compiler_params=pltpu.CompilerParams(
            dimension_semantics=("parallel", "parallel"),
            vmem_limit_bytes=vmem_limit,
        ),
    )(w_arg, b_arg, x3d)

    # Free reshape back to NCHW (no transpose needed).
    return out3d.reshape(N, Cout, H, W)


if __name__ == "__main__":
    key = jax.random.PRNGKey(0)
    k_x, k_w, k_b, k_x2, k_w2, k_b2 = jax.random.split(key, 6)

    def ref_conv1x1(x, w, b):
        co, ci = w.shape[0], w.shape[1]
        return (
            jnp.einsum("nchw,oc->nohw", x, w.reshape(co, ci),
                       precision=jax.lax.Precision.HIGHEST)
            + b.reshape(1, co, 1, 1)
        )

    # Case 1: tiny channel mix -> unrolled VPU path (e.g. UNet head Cin=4 -> Cout=3).
    N, Cin, Cout, H, W = 2, 4, 3, 16, 16
    x = jax.random.normal(k_x, (N, Cin, H, W), dtype=jnp.float32)
    weight = jax.random.normal(k_w, (Cout, Cin, 1, 1), dtype=jnp.float32) * 0.1
    bias = jax.random.normal(k_b, (Cout,), dtype=jnp.float32) * 0.1
    out = outconv_forward(x, weight, bias)
    jax.block_until_ready(out)
    assert out.shape == (N, Cout, H, W)
    assert jnp.allclose(out, ref_conv1x1(x, weight, bias), atol=1e-5, rtol=1e-5)

    # Case 2: larger channels + irregular spatial size -> MXU path with a cdiv
    # (partial tail) tile and the v7x two-tile split (N=1).
    N2, Cin2, Cout2, H2, W2 = 1, 32, 2, 20, 20
    x2 = jax.random.normal(k_x2, (N2, Cin2, H2, W2), dtype=jnp.float32)
    weight2 = jax.random.normal(k_w2, (Cout2, Cin2, 1, 1), dtype=jnp.float32) * 0.1
    bias2 = jax.random.normal(k_b2, (Cout2,), dtype=jnp.float32) * 0.1
    out2 = outconv_forward(x2, weight2, bias2)
    jax.block_until_ready(out2)
    assert out2.shape == (N2, Cout2, H2, W2)
    assert jnp.allclose(out2, ref_conv1x1(x2, weight2, bias2), atol=1e-3, rtol=1e-3)

    print("KERNEL_OK")
</pallas_src>

<mosaic_0001>
module attributes {stable_mosaic.version = 11 : i64} {
  func.func @kernel(%arg0: i32, %arg1: i32, %arg2: memref<12xf32, #tpu.memory_space<smem>>, %arg3: memref<3xf32, #tpu.memory_space<smem>>, %arg4: memref<1x4x256xf32, #tpu.memory_space<vmem>>, %arg5: memref<1x3x256xf32, #tpu.memory_space<vmem>>) attributes {dimension_semantics = [#tpu.dimension_semantics<parallel>, #tpu.dimension_semantics<parallel>], iteration_bounds = array<i64: 2, 1>, scalar_prefetch = 0 : i64, scratch_operands = 0 : i64, tpu.core_type = #tpu.core_type<tc>, window_params = [{transform_indices = @transform_0, window_bounds = array<i64: 12>}, {transform_indices = @transform_1, window_bounds = array<i64: 3>}, {transform_indices = @transform_2, window_bounds = array<i64: 1, 4, 256>}, {transform_indices = @transform_3, window_bounds = array<i64: 1, 3, 256>}]} {
    %c0 = arith.constant 0 : index
    %c0_0 = arith.constant 0 : index
    %c0_1 = arith.constant 0 : index
    %0 = vector.load %arg4[%c0, %c0_0, %c0_1] : memref<1x4x256xf32, #tpu.memory_space<vmem>>, vector<1x1x256xf32>
    %c0_2 = arith.constant 0 : index
    %1 = memref.load %arg2[%c0_2] : memref<12xf32, #tpu.memory_space<smem>>
    %2 = vector.broadcast %1 : f32 to vector<1x1x256xf32>
    %3 = arith.mulf %0, %2 : vector<1x1x256xf32>
    %c0_3 = arith.constant 0 : index
    %4 = memref.load %arg3[%c0_3] : memref<3xf32, #tpu.memory_space<smem>>
    %5 = vector.broadcast %4 : f32 to vector<1x1x256xf32>
    %6 = arith.addf %3, %5 : vector<1x1x256xf32>
    %c0_4 = arith.constant 0 : index
    %c1 = arith.constant 1 : index
    %c0_5 = arith.constant 0 : index
    %7 = vector.load %arg4[%c0_4, %c1, %c0_5] : memref<1x4x256xf32, #tpu.memory_space<vmem>>, vector<1x1x256xf32>
    %c1_6 = arith.constant 1 : index
    %8 = memref.load %arg2[%c1_6] : memref<12xf32, #tpu.memory_space<smem>>
    %9 = vector.broadcast %8 : f32 to vector<1x1x256xf32>
    %10 = arith.mulf %7, %9 : vector<1x1x256xf32>
    %11 = arith.addf %6, %10 : vector<1x1x256xf32>
    %c0_7 = arith.constant 0 : index
    %c2 = arith.constant 2 : index
    %c0_8 = arith.constant 0 : index
    %12 = vector.load %arg4[%c0_7, %c2, %c0_8] : memref<1x4x256xf32, #tpu.memory_space<vmem>>, vector<1x1x256xf32>
    %c2_9 = arith.constant 2 : index
    %13 = memref.load %arg2[%c2_9] : memref<12xf32, #tpu.memory_space<smem>>
    %14 = vector.broadcast %13 : f32 to vector<1x1x256xf32>
    %15 = arith.mulf %12, %14 : vector<1x1x256xf32>
    %16 = arith.addf %11, %15 : vector<1x1x256xf32>
    %c0_10 = arith.constant 0 : index
    %c3 = arith.constant 3 : index
    %c0_11 = arith.constant 0 : index
    %17 = vector.load %arg4[%c0_10, %c3, %c0_11] : memref<1x4x256xf32, #tpu.memory_space<vmem>>, vector<1x1x256xf32>
    %c3_12 = arith.constant 3 : index
    %18 = memref.load %arg2[%c3_12] : memref<12xf32, #tpu.memory_space<smem>>
    %19 = vector.broadcast %18 : f32 to vector<1x1x256xf32>
    %20 = arith.mulf %17, %19 : vector<1x1x256xf32>
    %21 = arith.addf %16, %20 : vector<1x1x256xf32>
    %c0_13 = arith.constant 0 : index
    %c0_14 = arith.constant 0 : index
    %c0_15 = arith.constant 0 : index
    %22 = vector.load %arg4[%c0_13, %c0_14, %c0_15] : memref<1x4x256xf32, #tpu.memory_space<vmem>>, vector<1x1x256xf32>
    %c4 = arith.constant 4 : index
    %23 = memref.load %arg2[%c4] : memref<12xf32, #tpu.memory_space<smem>>
    %24 = vector.broadcast %23 : f32 to vector<1x1x256xf32>
    %25 = arith.mulf %22, %24 : vector<1x1x256xf32>
    %c1_16 = arith.constant 1 : index
    %26 = memref.load %arg3[%c1_16] : memref<3xf32, #tpu.memory_space<smem>>
    %27 = vector.broadcast %26 : f32 to vector<1x1x256xf32>
    %28 = arith.addf %25, %27 : vector<1x1x256xf32>
    %c0_17 = arith.constant 0 : index
    %c1_18 = arith.constant 1 : index
    %c0_19 = arith.constant 0 : index
    %29 = vector.load %arg4[%c0_17, %c1_18, %c0_19] : memref<1x4x256xf32, #tpu.memory_space<vmem>>, vector<1x1x256xf32>
    %c5 = arith.constant 5 : index
    %30 = memref.load %arg2[%c5] : memref<12xf32, #tpu.memory_space<smem>>
    %31 = vector.broadcast %30 : f32 to vector<1x1x256xf32>
    %32 = arith.mulf %29, %31 : vector<1x1x256xf32>
    %33 = arith.addf %28, %32 : vector<1x1x256xf32>
    %c0_20 = arith.constant 0 : index
    %c2_21 = arith.constant 2 : index
    %c0_22 = arith.constant 0 : index
    %34 = vector.load %arg4[%c0_20, %c2_21, %c0_22] : memref<1x4x256xf32, #tpu.memory_space<vmem>>, vector<1x1x256xf32>
    %c6 = arith.constant 6 : index
    %35 = memref.load %arg2[%c6] : memref<12xf32, #tpu.memory_space<smem>>
    %36 = vector.broadcast %35 : f32 to vector<1x1x256xf32>
    %37 = arith.mulf %34, %36 : vector<1x1x256xf32>
    %38 = arith.addf %33, %37 : vector<1x1x256xf32>
    %c0_23 = arith.constant 0 : index
    %c3_24 = arith.constant 3 : index
    %c0_25 = arith.constant 0 : index
    %39 = vector.load %arg4[%c0_23, %c3_24, %c0_25] : memref<1x4x256xf32, #tpu.memory_space<vmem>>, vector<1x1x256xf32>
    %c7 = arith.constant 7 : index
    %40 = memref.load %arg2[%c7] : memref<12xf32, #tpu.memory_space<smem>>
    %41 = vector.broadcast %40 : f32 to vector<1x1x256xf32>
    %42 = arith.mulf %39, %41 : vector<1x1x256xf32>
    %43 = arith.addf %38, %42 : vector<1x1x256xf32>
    %c0_26 = arith.constant 0 : index
    %c0_27 = arith.constant 0 : index
    %c0_28 = arith.constant 0 : index
    %44 = vector.load %arg4[%c0_26, %c0_27, %c0_28] : memref<1x4x256xf32, #tpu.memory_space<vmem>>, vector<1x1x256xf32>
    %c8 = arith.constant 8 : index
    %45 = memref.load %arg2[%c8] : memref<12xf32, #tpu.memory_space<smem>>
    %46 = vector.broadcast %45 : f32 to vector<1x1x256xf32>
    %47 = arith.mulf %44, %46 : vector<1x1x256xf32>
    %c2_29 = arith.constant 2 : index
    %48 = memref.load %arg3[%c2_29] : memref<3xf32, #tpu.memory_space<smem>>
    %49 = vector.broadcast %48 : f32 to vector<1x1x256xf32>
    %50 = arith.addf %47, %49 : vector<1x1x256xf32>
    %c0_30 = arith.constant 0 : index
    %c1_31 = arith.constant 1 : index
    %c0_32 = arith.constant 0 : index
    %51 = vector.load %arg4[%c0_30, %c1_31, %c0_32] : memref<1x4x256xf32, #tpu.memory_space<vmem>>, vector<1x1x256xf32>
    %c9 = arith.constant 9 : index
    %52 = memref.load %arg2[%c9] : memref<12xf32, #tpu.memory_space<smem>>
    %53 = vector.broadcast %52 : f32 to vector<1x1x256xf32>
    %54 = arith.mulf %51, %53 : vector<1x1x256xf32>
    %55 = arith.addf %50, %54 : vector<1x1x256xf32>
    %c0_33 = arith.constant 0 : index
    %c2_34 = arith.constant 2 : index
    %c0_35 = arith.constant 0 : index
    %56 = vector.load %arg4[%c0_33, %c2_34, %c0_35] : memref<1x4x256xf32, #tpu.memory_space<vmem>>, vector<1x1x256xf32>
    %c10 = arith.constant 10 : index
    %57 = memref.load %arg2[%c10] : memref<12xf32, #tpu.memory_space<smem>>
    %58 = vector.broadcast %57 : f32 to vector<1x1x256xf32>
    %59 = arith.mulf %56, %58 : vector<1x1x256xf32>
    %60 = arith.addf %55, %59 : vector<1x1x256xf32>
    %c0_36 = arith.constant 0 : index
    %c3_37 = arith.constant 3 : index
    %c0_38 = arith.constant 0 : index
    %61 = vector.load %arg4[%c0_36, %c3_37, %c0_38] : memref<1x4x256xf32, #tpu.memory_space<vmem>>, vector<1x1x256xf32>
    %c11 = arith.constant 11 : index
    %62 = memref.load %arg2[%c11] : memref<12xf32, #tpu.memory_space<smem>>
    %63 = vector.broadcast %62 : f32 to vector<1x1x256xf32>
    %64 = arith.mulf %61, %63 : vector<1x1x256xf32>
    %65 = arith.addf %60, %64 : vector<1x1x256xf32>
    %66 = tpu.concatenate %21, %43, %65 in 1 : vector<1x1x256xf32>, vector<1x1x256xf32>, vector<1x1x256xf32> -> vector<1x3x256xf32>
    %c0_39 = arith.constant 0 : index
    %c0_40 = arith.constant 0 : index
    %c0_41 = arith.constant 0 : index
    %67 = vector.load %arg5[%c0_39, %c0_40, %c0_41] : memref<1x3x256xf32, #tpu.memory_space<vmem>>, vector<1x3x256xf32>
    tpu.vector_store %arg5[%c0_39, %c0_40, %c0_41], %66 {strides = array<i32>} : memref<1x3x256xf32, #tpu.memory_space<vmem>>, vector<1x3x256xf32>,
    return
  }
  func.func @transform_0(%arg0: i32, %arg1: i32) -> i32 {
    %c0_i32 = arith.constant 0 : i32
    %c0_i32_0 = arith.constant 0 : i32
    return %c0_i32 : i32
  }
  func.func @transform_1(%arg0: i32, %arg1: i32) -> i32 {
    %c0_i32 = arith.constant 0 : i32
    %c0_i32_0 = arith.constant 0 : i32
    return %c0_i32 : i32
  }
  func.func @transform_2(%arg0: i32, %arg1: i32) -> (i32, i32, i32) {
    %c0_i32 = arith.constant 0 : i32
    %c0_i32_0 = arith.constant 0 : i32
    return %arg0, %c0_i32, %arg1 : i32, i32, i32
  }
  func.func @transform_3(%arg0: i32, %arg1: i32) -> (i32, i32, i32) {
    %c0_i32 = arith.constant 0 : i32
    %c0_i32_0 = arith.constant 0 : i32
    return %arg0, %c0_i32, %arg1 : i32, i32, i32
  }
}

</mosaic_0001>

<llo_original>
// kernel: tpu_custom_call.1
$region0: #{tpu_custom_call.1}
  #allocation0 [shape = 'u32[]', space=smem, size = 0x4, offset = 0x4, fixed_abs, tag = 'smem constant byte address 0x4 - core index']
  #allocation1 [shape = 'u32[144,128]{1,0:T(1,128)}', space=vmem, size = 0x12000, scoped, tag = 'internal scratch']
  %s0 = inlined_call_operand.hbm [shape: f32[12], index: 0, kind: input, shape index: {}]
  %s1 = inlined_call_operand.vmem [shape: f32[3], index: 1, kind: input, shape index: {}]
  %s2 = inlined_call_operand.hbm [shape: f32[2,4,256], index: 2, kind: input, shape index: {}]
  %s3 = inlined_call_operand.vmem [shape: f32[2,3,256], index: 3, kind: output, shape index: {}]
  %s4 = sld [smem:[#allocation0]]
  $region57: #{tpu_custom_call.1} parent=0
    _
  %s6 = ssub.s32 1, %s4
  %s7 = scalar_select 0, %s6, %s4
  $region1: #{tpu_custom_call.1} parent=0
    #allocation2 [shape = 'u8[512]{0}', space=smem, size = 0x200, scoped, tag = 'input window, operand 0, single buffered']
    #allocation3 [shape = 's32[2]{0}', space=sflag, size = 0x8, scoped, tag = 'scoped memory for tpu_custom_call.1']
    #allocation4 [shape = 's32[2]{0}', space=sflag, size = 0x8, scoped, tag = 'scoped memory for tpu_custom_call.1']
    #allocation5 [shape = 's32[2]{0}', space=sflag, size = 0x8, scoped, tag = 'scoped memory for tpu_custom_call.1']
    #allocation6 [shape = 'u8[512]{0}', space=smem, size = 0x200, scoped, tag = 'input window, operand 1, single buffered']
    #allocation7 [shape = 'u8[8192]{0}', space=vmem, size = 0x2000, scoped, tag = 'input window, operand 2']
    %8 = vsyncpa [#allocation4], 0
    %9 = vsyncpa [#allocation5], 0
    %10 = vsyncpa [#allocation3], 0
    %s11 = scalar_lea.sflag [#allocation3], 1
    %12 = vsyncpa %s11, 0
    loop: start=0, step=1, limit=4
    $region2: #{tpu_custom_call.1} parent=1 // loop_pre_header
      _
    $region3: #{tpu_custom_call.1} parent=1 // loop_header
      %s14 = sphi 0, %s18
      %p15 = scmp.ge.s32.totalorder %s14, 4
      %s21 = sphi 0, %s33
      %s22 = sphi 0, %s29
      %s23 = sphi 0, %s21
      %s24 = sphi 0, %s22
      %s25 = sphi 0, %s23
      %s26 = sphi 0, %s24
      %s34 = sphi 0, %s34
      %s36 = sphi 0, %s34
      %s37 = sphi 0, %s36
      %s51 = sphi 0, %s37
      %s55 = sphi 0, %s55
      %s57 = sphi 0, %s55
      %s58 = sphi 0, %s57
      %s72 = sphi 0, %s58
      %s80 = sphi 0, %s82
      %s83 = sphi 0, %s80
      %s84 = sphi 0, %s83
      %s100 = sphi 0, %s84
      %s108 = sphi 0, %s110
      %s111 = sphi 0, %s108
      %s112 = sphi 0, %s111
      %s128 = sphi 0, %s112
    $region4: #{tpu_custom_call.1} parent=1 // loop_header_branch
      %17 = sbr.rel (%p15) target = $region8
    $region5: #{tpu_custom_call.1} parent=1 // loop_body
      %s19 = ssub.s32 %s14, 1
      %s20 = ssub.s32 %s14, 2
      %s27 = sadd.s32 1, %s22
      %p28 = scmp.ge.s32.totalorder %s27, 1
      %s29 = scalar_select %p28, 0, %s27
      %s30 = sadd.s32 1, %s21
      %s31 = scalar_select %p28, %s30, %s21
      %p32 = scmp.ge.s32.totalorder %s31, 2
      %s33 = scalar_select %p32, 0, %s31
      %s35 = sadd.s32 %s34, 1
      %p38 = scmp.eq.s32.totalorder %s14, 1
      %p39 = scmp.ne.s32.totalorder %s34, %s36
      %p40 = scmp.eq.s32.totalorder %s14, 0
      %p41 = por %p39, %p40
      %p42 = scmp.ne.s32.totalorder %s34, %s36
      %p43 = scmp.eq.s32.totalorder %s19, 1
      %p44 = por %p42, %p43
      %p45 = scmp.ne.s32.totalorder %s36, %s37
      %p46 = scmp.eq.s32.totalorder %s19, 0
      %p47 = por %p45, %p46
      %p48 = scmp.ne.s32.totalorder %s36, %s37
      %p49 = scmp.eq.s32.totalorder %s20, 1
      %p50 = por %p48, %p49
      %p52 = scmp.ne.s32.totalorder %s37, %s51
      %p53 = scmp.eq.s32.totalorder %s20, 0
      %p54 = por %p52, %p53
      %s56 = sadd.s32 %s55, 1
      %p59 = scmp.eq.s32.totalorder %s14, 1
      %p60 = scmp.ne.s32.totalorder %s55, %s57
      %p61 = scmp.eq.s32.totalorder %s14, 0
      %p62 = por %p60, %p61
      %p63 = scmp.ne.s32.totalorder %s55, %s57
      %p64 = scmp.eq.s32.totalorder %s19, 1
      %p65 = por %p63, %p64
      %p66 = scmp.ne.s32.totalorder %s57, %s58
      %p67 = scmp.eq.s32.totalorder %s19, 0
      %p68 = por %p66, %p67
      %p69 = scmp.ne.s32.totalorder %s57, %s58
      %p70 = scmp.eq.s32.totalorder %s20, 1
      %p71 = por %p69, %p70
      %p73 = scmp.ne.s32.totalorder %s58, %s72
      %p74 = scmp.eq.s32.totalorder %s20, 0
      %p75 = por %p73, %p74
      %s76 = ssub.s32 %s21, %s33
      %s77 = ssub.s32 %s22, %s29
      %s78 = sor.u32 %s76, %s77
      %p79 = scmp.eq.s32.totalorder %s78, 0
      %s81 = sadd.s32 %s80, 1
      %s82 = scalar_select %p79, %s80, %s81
      %p85 = pneg %p79
      %p86 = scmp.eq.s32.totalorder %s14, 1
      %p87 = por %p85, %p86
      %p88 = scmp.ne.s32.totalorder %s80, %s83
      %p89 = scmp.eq.s32.totalorder %s14, 0
      %p90 = por %p88, %p89
      %p91 = scmp.ne.s32.totalorder %s80, %s83
      %p92 = scmp.eq.s32.totalorder %s19, 1
      %p93 = por %p91, %p92
      %p94 = scmp.ne.s32.totalorder %s83, %s84
      %p95 = scmp.eq.s32.totalorder %s19, 0
      %p96 = por %p94, %p95
      %p97 = scmp.ne.s32.totalorder %s83, %s84
      %p98 = scmp.eq.s32.totalorder %s20, 1
      %p99 = por %p97, %p98
      %p101 = scmp.ne.s32.totalorder %s84, %s100
      %p102 = scmp.eq.s32.totalorder %s20, 0
      %p103 = por %p101, %p102
      %s104 = ssub.s32 %s21, %s33
      %s105 = ssub.s32 %s22, %s29
      %s106 = sor.u32 %s104, %s105
      %p107 = scmp.eq.s32.totalorder %s106, 0
      %s109 = sadd.s32 %s108, 1
      %s110 = scalar_select %p107, %s108, %s109
      %p113 = pneg %p107
      %p114 = scmp.eq.s32.totalorder %s14, 1
      %p115 = por %p113, %p114
      %p116 = scmp.ne.s32.totalorder %s108, %s111
      %p117 = scmp.eq.s32.totalorder %s14, 0
      %p118 = por %p116, %p117
      %p119 = scmp.ne.s32.totalorder %s108, %s111
      %p120 = scmp.eq.s32.totalorder %s19, 1
      %p121 = por %p119, %p120
      %p122 = scmp.ne.s32.totalorder %s111, %s112
      %p123 = scmp.eq.s32.totalorder %s19, 0
      %p124 = por %p122, %p123
      %p125 = scmp.ne.s32.totalorder %s111, %s112
      %p126 = scmp.eq.s32.totalorder %s20, 1
      %p127 = por %p125, %p126
      %p129 = scmp.ne.s32.totalorder %s112, %s128
      %p130 = scmp.eq.s32.totalorder %s20, 0
      %p131 = por %p129, %p130
      %p132 = scmp.le.s32.totalorder 1, %s14
      %p133 = scmp.lt.s32.totalorder %s14, 3
      %p134 = pnand %p132, %p133
      %p135 = pneg %p134
      // Predicated region
      $region9: #{tpu_custom_call.1} parent=5 // pred_check
        _
      $region10: #{tpu_custom_call.1} parent=5 // pred_check_branch
        %137 = sbr.rel (%p134) target = $region12
      $region11: #{tpu_custom_call.1} parent=5 // pred_region
        %s138 = ssub.s32 %s14, 1
        // Predicated region
        $region13: #{tpu_custom_call.1} parent=11 // pred_check
          %p139 = pneg %p47
        $region14: #{tpu_custom_call.1} parent=11 // pred_check_branch
          %141 = sbr.rel (%p139) target = $region16
        $region15: #{tpu_custom_call.1} parent=11 // pred_region
          %s143 = ssub.s32 16, 16
          %144 = vsyncadd [#allocation4], %s143
          %147 = dma.hbm_to_smem %s0, 16, [#allocation2], [#allocation4]
        $region16: #{tpu_custom_call.1} parent=11 // pred_fallthru
          _
        // Predicated region
        $region17: #{tpu_custom_call.1} parent=11 // pred_check
          %p148 = pneg %p68
        $region18: #{tpu_custom_call.1} parent=11 // pred_check_branch
          %150 = sbr.rel (%p148) target = $region20
        $region19: #{tpu_custom_call.1} parent=11 // pred_region
          %s152 = ssub.s32 16, 16
          %153 = vsyncadd [#allocation5], %s152
          %s155 = sshll.u32 %s1, 4
          %s156 = int_to_ptr.vmem [resolvable:$true] %s155
          %158 = dma.vmem_to_smem %s156, 16, [#allocation6], [#allocation5]
        $region20: #{tpu_custom_call.1} parent=11 // pred_fallthru
          _
      $region12: #{tpu_custom_call.1} parent=5 // pred_fallthru
        _
      %p159 = scmp.lt.s32.totalorder %s14, 2
      // Predicated region
      $region21: #{tpu_custom_call.1} parent=5 // pred_check
        %p160 = pneg %p159
      $region22: #{tpu_custom_call.1} parent=5 // pred_check_branch
        %162 = sbr.rel (%p160) target = $region24
      $region23: #{tpu_custom_call.1} parent=5 // pred_region
        // Predicated region
        $region25: #{tpu_custom_call.1} parent=23 // pred_check
          %p163 = pneg %p90
        $region26: #{tpu_custom_call.1} parent=23 // pred_check_branch
          %165 = sbr.rel (%p163) target = $region28
        $region27: #{tpu_custom_call.1} parent=23 // pred_region
          %s166 = sand.u32 %s80, 1
          %s167 = scalar_lea.sflag [#allocation3], %s166
          %s168 = sand.u32 %s80, 1
          %s169 = smul.addr %s168, 8
          %s170 = scalar_lea.vmem [#allocation7], %s169
          %s171 = smul.u32 2, %s22
          %s173 = ssub.s32 128, 128
          %174 = vsyncadd %s167, %s173
          %s175 = smul.addr %s21, 2
          %s176 = sadd.s32 %s171, %s175
          %s177 = smul.addr %s176, 64
          %s178 = scalar_lea.hbm %s2, %s177
          %s180 = sshll.u32 %s170, 4
          %s181 = int_to_ptr.vmem [resolvable:$true] %s180
          %183 = dma.hbm_to_vmem [thread:$0]  %s178, 128, %s181, %s167
        $region28: #{tpu_custom_call.1} parent=23 // pred_fallthru
          _
      $region24: #{tpu_custom_call.1} parent=5 // pred_fallthru
        _
      %p184 = scmp.le.s32.totalorder 1, %s14
      %p185 = scmp.lt.s32.totalorder %s14, 3
      %p186 = pnand %p184, %p185
      %p187 = pneg %p186
      // Predicated region
      $region29: #{tpu_custom_call.1} parent=5 // pred_check
        _
      $region30: #{tpu_custom_call.1} parent=5 // pred_check_branch
        %189 = sbr.rel (%p186) target = $region32
      $region31: #{tpu_custom_call.1} parent=5 // pred_region
        %s190 = ssub.s32 %s14, 1
        // Predicated region
        $region33: #{tpu_custom_call.1} parent=31 // pred_check
          %p191 = pneg %p47
        $region34: #{tpu_custom_call.1} parent=31 // pred_check_branch
          %193 = sbr.rel (%p191) target = $region36
        $region35: #{tpu_custom_call.1} parent=31 // pred_region
          %194 = dma.done [#allocation4], 16
        $region36: #{tpu_custom_call.1} parent=31 // pred_fallthru
          _
        // Predicated region
        $region37: #{tpu_custom_call.1} parent=31 // pred_check
          %p195 = pneg %p68
        $region38: #{tpu_custom_call.1} parent=31 // pred_check_branch
          %197 = sbr.rel (%p195) target = $region40
        $region39: #{tpu_custom_call.1} parent=31 // pred_region
          %198 = dma.done [#allocation5], 16
        $region40: #{tpu_custom_call.1} parent=31 // pred_fallthru
          _
        %s199 = sand.u32 %s83, 1
        %s200 = scalar_lea.sflag [#allocation3], %s199
        %s201 = sand.u32 %s83, 1
        %s202 = smul.addr %s201, 8
        %s203 = scalar_lea.vmem [#allocation7], %s202
        // Predicated region
        $region41: #{tpu_custom_call.1} parent=31 // pred_check
          %p204 = pneg %p96
        $region42: #{tpu_custom_call.1} parent=31 // pred_check_branch
          %206 = sbr.rel (%p204) target = $region44
        $region43: #{tpu_custom_call.1} parent=31 // pred_region
          %207 = dma.done %s200, 128
        $region44: #{tpu_custom_call.1} parent=31 // pred_fallthru
          _
        %208 = sfence
        %p209 = pneg %p47
        %p210 = pneg %p44
        %p211 = pneg %p68
        %p212 = pneg %p65
        %s213 = sand.u32 %s83, 1
        %s214 = scalar_lea.sflag [#allocation3], %s213
        %s215 = sand.u32 %s83, 1
        %s216 = smul.addr %s215, 8
        %s217 = scalar_lea.vmem [#allocation7], %s216
        %p218 = pneg %p96
        %p219 = pneg %p93
        %p220 = pneg %p124
        %p221 = pneg %p121
        %s222 = smul.u32 2, %s24
        %p223 = scmp.lt.s32.totalorder %s23, 1
        %s224 = scalar_select %p223, %s23, 1
        %p225 = scmp.lt.s32.totalorder %s222, 1
        %s226 = scalar_select %p225, %s222, 1
        %s227 = smul.addr %s224, 2
        %s228 = sadd.s32 %s226, %s227
        %s229 = smul.addr %s228, 4
        %s230 = scalar_lea.vmem %s3, %s229
        %s231 = smul.u32 2, %s24
        %s232 = smul.u32 2, %s24
        %p233 = scmp.lt.s32.totalorder %s23, 1
        %s234 = scalar_select %p233, %s23, 1
        %p235 = scmp.lt.s32.totalorder %s232, 1
        %s236 = scalar_select %p235, %s232, 1
        %s237 = smul.addr %s234, 2
        %s238 = sadd.s32 %s236, %s237
        %s239 = smul.addr %s238, 4
        %s240 = scalar_lea.vmem %s3, %s239
        %s241 = smul.u32 2, %s24
        %v242 = vld [vmem:[%s203] ss:$4 sm:$0x3]
        %s243 = sld [smem:[#allocation2]]
        %v244 = vstv %s243
        %v245 = vmul.f32 %v242, %v244
        %s246 = sld [smem:[#allocation6]]
        %v247 = vstv %s246
        %v248 = vadd.f32 %v245, %v247
        %s249 = scalar_lea.vmem %s203, 1 [#allocation7]
        %v250 = vld [vmem:[%s249] ss:$4 sm:$0x3]
        %s251 = sld [smem:[#allocation2 + $0x1]]
        %v252 = vstv %s251
        %v253 = vmul.f32 %v250, %v252
        %v254 = vadd.f32 %v248, %v253
        %s255 = scalar_lea.vmem %s203, 2 [#allocation7]
        %v256 = vld [vmem:[%s255] ss:$4 sm:$0x3]
        %s257 = sld [smem:[#allocation2 + $0x2]]
        %v258 = vstv %s257
        %v259 = vmul.f32 %v256, %v258
        %v260 = vadd.f32 %v254, %v259
        %s261 = scalar_lea.vmem %s203, 3 [#allocation7]
        %v262 = vld [vmem:[%s261] ss:$4 sm:$0x3]
        %s263 = sld [smem:[#allocation2 + $0x3]]
        %v264 = vstv %s263
        %v265 = vmul.f32 %v262, %v264
        %v266 = vadd.f32 %v260, %v265
        %s267 = sld [smem:[#allocation2 + $0x4]]
        %v268 = vstv %s267
        %v269 = vmul.f32 %v242, %v268
        %s270 = sld [smem:[#allocation6 + $0x1]]
        %v271 = vstv %s270
        %v272 = vadd.f32 %v269, %v271
        %s273 = sld [smem:[#allocation2 + $0x5]]
        %v274 = vstv %s273
        %v275 = vmul.f32 %v250, %v274
        %v276 = vadd.f32 %v272, %v275
        %s277 = sld [smem:[#allocation2 + $0x6]]
        %v278 = vstv %s277
        %v279 = vmul.f32 %v256, %v278
        %v280 = vadd.f32 %v276, %v279
        %s281 = sld [smem:[#allocation2 + $0x7]]
        %v282 = vstv %s281
        %v283 = vmul.f32 %v262, %v282
        %v284 = vadd.f32 %v280, %v283
        %s285 = sld [smem:[#allocation2 + $0x8]]
        %v286 = vstv %s285
        %v287 = vmul.f32 %v242, %v286
        %s288 = sld [smem:[#allocation6 + $0x2]]
        %v289 = vstv %s288
        %v290 = vadd.f32 %v287, %v289
        %s291 = sld [smem:[#allocation2 + $0x9]]
        %v292 = vstv %s291
        %v293 = vmul.f32 %v250, %v292
        %v294 = vadd.f32 %v290, %v293
        %s295 = sld [smem:[#allocation2 + $0xa]]
        %v296 = vstv %s295
        %v297 = vmul.f32 %v256, %v296
        %v298 = vadd.f32 %v294, %v297
        %s299 = sld [smem:[#allocation2 + $0xb]]
        %v300 = vstv %s299
        %v301 = vmul.f32 %v262, %v300
        %v302 = vadd.f32 %v298, %v301
        %v304 = vlaneseq
        %v305 = vshrl.u32 %v304, 7
        %v306 = vsub.s32 0, %v305
        %v307 = vrot.slane %v266, %v306
        %v308 = vlaneseq
        %v309 = vshrl.u32 %v308, 7
        %v310 = vsub.s32 1, %v309
        %v311 = vrot.slane %v266, %v310
        %v315 = vlaneseq
        %v316 = vshrl.u32 %v315, 7
        %v317 = vsub.s32 0, %v316
        %v318 = vrot.slane %v284, %v317
        %v319 = vlaneseq
        %v320 = vshrl.u32 %v319, 7
        %v321 = vsub.s32 1, %v320
        %v322 = vrot.slane %v284, %v321
        %v326 = vlaneseq
        %v327 = vshrl.u32 %v326, 7
        %v328 = vsub.s32 0, %v327
        %v329 = vrot.slane %v302, %v328
        %v330 = vlaneseq
        %v331 = vshrl.u32 %v330, 7
        %v332 = vsub.s32 1, %v331
        %v333 = vrot.slane %v302, %v332
        %vm336 = vcmask 1040384
        %v337 = vsel %vm336, %v307, %v318
        %v338 = vsel %vm336, %v311, %v322
        %vm339 = vcmask 1041408
        %v340 = vsel %vm339, %v337, %v329
        %v341 = vsel %vm339, %v338, %v333
        %v344 = vcombine.low %v340, %v341
        %346 = vst [vmem:[%s240] sm:$0x77] %v344
        %s347 = smul.u32 2, %s24
        %p348 = scmp.lt.s32.totalorder %s23, 1
        %s349 = scalar_select %p348, %s23, 1
        %p350 = scmp.lt.s32.totalorder %s347, 1
        %s351 = scalar_select %p350, %s347, 1
        %s352 = smul.addr %s349, 2
        %s353 = sadd.s32 %s351, %s352
        %s354 = smul.addr %s353, 4
        %s355 = scalar_lea.vmem %s3, %s354
        // Predicated region
        $region45: #{tpu_custom_call.1} parent=31 // pred_check
          %p356 = pneg %p121
        $region46: #{tpu_custom_call.1} parent=31 // pred_check_branch
          %358 = sbr.rel (%p356) target = $region48
        $region47: #{tpu_custom_call.1} parent=31 // pred_region
          %s359 = smul.u32 2, %s24
        $region48: #{tpu_custom_call.1} parent=31 // pred_fallthru
          _
      $region32: #{tpu_custom_call.1} parent=5 // pred_fallthru
        _
      %p360 = scmp.le.s32.totalorder 2, %s14
      // Predicated region
      $region49: #{tpu_custom_call.1} parent=5 // pred_check
        %p361 = pneg %p360
      $region50: #{tpu_custom_call.1} parent=5 // pred_check_branch
        %363 = sbr.rel (%p361) target = $region52
      $region51: #{tpu_custom_call.1} parent=5 // pred_region
        %s364 = ssub.s32 %s14, 2
        // Predicated region
        $region53: #{tpu_custom_call.1} parent=51 // pred_check
          %p365 = pneg %p127
        $region54: #{tpu_custom_call.1} parent=51 // pred_check_branch
          %367 = sbr.rel (%p365) target = $region56
        $region55: #{tpu_custom_call.1} parent=51 // pred_region
          %s368 = smul.u32 2, %s26
          %p369 = scmp.lt.s32.totalorder %s25, 1
          %s370 = scalar_select %p369, %s25, 1
          %p371 = scmp.lt.s32.totalorder %s368, 1
          %s372 = scalar_select %p371, %s368, 1
          %s373 = smul.addr %s370, 2
          %s374 = sadd.s32 %s372, %s373
          %s375 = smul.addr %s374, 4
          %s376 = scalar_lea.vmem %s3, %s375
        $region56: #{tpu_custom_call.1} parent=51 // pred_fallthru
          _
      $region52: #{tpu_custom_call.1} parent=5 // pred_fallthru
        _
    $region6: #{tpu_custom_call.1} parent=1 // loop_footer
      %s18 = sadd.s32 1, %s14
    $region7: #{tpu_custom_call.1} parent=1 // loop_footer_branch
      %13 = sbr.rel target = $region3
    $region8: #{tpu_custom_call.1} parent=1 // loop_exit
      _
    %377 = vsyncpa [#allocation3], 1
    %s378 = scalar_lea.sflag [#allocation3], 1
    %379 = vsyncpa %s378, 1
    %380 = vsyncpa [#allocation4], 1
    %s381 = scalar_lea.sflag [#allocation4], 1
    %382 = vsyncpa %s381, 1
    %383 = vsyncpa [#allocation5], 1
    %s384 = scalar_lea.sflag [#allocation5], 1
    %385 = vsyncpa %s384, 1

</llo_original>
